<compile_context>
chip_gen: v7x
topology: tpu7x:2x2x1
jax: 0.10.0
libtpu: 0.0.40
codegen_flags: <defaults>
</compile_context>

<pallas_src>
import jax
import jax.numpy as jnp
from jax.experimental import pallas as pl
from jax.experimental.pallas import tpu as pltpu


def _segment_embedding_kernel(ids_ref, table_ref, out_ref):
    # ids_ref:   (tile, 1) int32
    # table_ref: (3, H)    table dtype (full table resident in VMEM)
    # out_ref:   (tile, H) out dtype
    ids = ids_ref[...]                    # (tile, 1)
    r0 = table_ref[0:1, :]                # (1, H)
    r1 = table_ref[1:2, :]                # (1, H)
    r2 = table_ref[2:3, :]                # (1, H)
    # Two compares + two selects on the VPU; (tile,1) x (1,H) broadcasts.
    sel = jnp.where(ids == 0, r0, jnp.where(ids == 1, r1, r2))
    out_ref[...] = sel.astype(out_ref.dtype)


def _round_up(x, m):
    return ((x + m - 1) // m) * m


def segment_embedding(x, table, *, tile=512, out_dtype=None):
    """x: (B, S) int32 segment ids in {0, 1, 2}; table: (3, H).

    Returns (B, S, H) embeddings, matching nn.Embedding(3, H, padding_idx=pad)
    whose padding row has been zeroed at init time.
    """
    B, S = x.shape
    num_emb, H = table.shape
    out_dtype = table.dtype if out_dtype is None else out_dtype

    N = B * S
    # Row tile: multiple of 8 (sublane), never larger than the padded input.
    tile = min(_round_up(tile, 8), _round_up(N, 8))
    N_pad = _round_up(N, tile)
    grid_len = pl.cdiv(N_pad, tile)

    ids_flat = x.reshape(-1).astype(jnp.int32)
    if N_pad != N:
        ids_flat = jnp.pad(ids_flat, (0, N_pad - N))   # padded rows sliced off below
    ids_flat = ids_flat.reshape(N_pad, 1)

    out_isize = jnp.dtype(out_dtype).itemsize
    tab_isize = jnp.dtype(table.dtype).itemsize

    # Bandwidth-dominated: one (N,H) write + ids read + one table read.
    cost = pl.CostEstimate(
        flops=4 * N_pad * H,
        transcendentals=0,
        bytes_accessed=N_pad * H * out_isize + N_pad * 4 + num_emb * H * tab_isize,
    )

    # Double-buffered output + ids blocks + resident table, with headroom;
    # clamped so it stays well inside v7x's 64 MiB physical VMEM.
    per_step = tile * H * out_isize + tile * 4
    vmem_limit = int(
        min(48 << 20,
            max(16 << 20, 2 * per_step + num_emb * H * tab_isize + (2 << 20)))
    )

    out_flat = pl.pallas_call(
        _segment_embedding_kernel,
        out_shape=jax.ShapeDtypeStruct((N_pad, H), out_dtype),
        grid_spec=pltpu.PrefetchScalarGridSpec(
            num_scalar_prefetch=0,
            grid=(grid_len,),
            in_specs=[
                pl.BlockSpec((tile, 1), lambda i: (i, 0)),       # ids tile
                pl.BlockSpec((num_emb, H), lambda i: (0, 0)),    # full table, resident
            ],
            out_specs=pl.BlockSpec((tile, H), lambda i: (i, 0)),
        ),
        compiler_params=pltpu.CompilerParams(
            dimension_semantics=("parallel",),
            vmem_limit_bytes=vmem_limit,
        ),
        cost_estimate=cost,
    )(ids_flat, table)

    return out_flat[:N].reshape(B, S, H)


def make_segment_embedding_table(key, hidden_dim, pad_token_id):
    """Deterministic init matching nn.Embedding(3, H, padding_idx=pad):
    rows ~ N(0, 1), padding row zeroed."""
    table = jax.random.normal(key, (3, hidden_dim), dtype=jnp.float32)
    table = table.at[pad_token_id].set(0.0)
    return table


if __name__ == "__main__":
    key = jax.random.PRNGKey(0)
    k_tab, k_ids = jax.random.split(key)

    hidden_dim = 32
    pad_token_id = 0
    B, S = 2, 8

    table = make_segment_embedding_table(k_tab, hidden_dim, pad_token_id)
    x = jax.random.randint(k_ids, (B, S), 0, 3, dtype=jnp.int32)

    out = segment_embedding(x, table)
    out = jax.block_until_ready(out)

    # Reference check (pure JAX gather, same as nn.Embedding forward).
    ref = table[x]
    assert out.shape == (B, S, hidden_dim)
    assert jnp.allclose(out, ref, atol=1e-6), "mismatch vs reference embedding"
    # Padding rows must be exactly zero.
    assert jnp.all(jnp.where((x == pad_token_id)[..., None], out == 0.0, True))

    # Larger, realistic shape covering the multi-tile (grid > 1) path.
    B2, S2, H2 = 4, 512, 128
    table2 = make_segment_embedding_table(k_tab, H2, pad_token_id)
    x2 = jax.random.randint(k_ids, (B2, S2), 0, 3, dtype=jnp.int32)
    out2 = jax.block_until_ready(segment_embedding(x2, table2, tile=512))
    assert jnp.allclose(out2, table2[x2], atol=1e-6)

    # bf16-output path (halved write traffic) stays numerically consistent.
    out3 = jax.block_until_ready(
        segment_embedding(x2, table2, tile=512, out_dtype=jnp.bfloat16))
    assert jnp.allclose(out3.astype(jnp.float32),
                        table2[x2].astype(jnp.bfloat16).astype(jnp.float32))

    print("KERNEL_OK")
</pallas_src>

<mosaic_0001>
module attributes {stable_mosaic.version = 11 : i64} {
  func.func @_segment_embedding_kernel(%arg0: i32, %arg1: memref<16x1xi32, #tpu.memory_space<vmem>>, %arg2: memref<3x32xf32, #tpu.memory_space<vmem>>, %arg3: memref<16x32xf32, #tpu.memory_space<vmem>>) attributes {dimension_semantics = [#tpu.dimension_semantics<parallel>], iteration_bounds = array<i64: 1>, scalar_prefetch = 0 : i64, scratch_operands = 0 : i64, tpu.core_type = #tpu.core_type<tc>, window_params = [{transform_indices = @transform_0, window_bounds = array<i64: 16, 1>}, {pipeline_mode = #tpu.pipeline_mode<synchronous>, transform_indices = @transform_1, window_bounds = array<i64: 3, 32>}, {transform_indices = @transform_2, window_bounds = array<i64: 16, 32>}]} {
    %c0 = arith.constant 0 : index
    %c0_0 = arith.constant 0 : index
    %0 = vector.load %arg1[%c0, %c0_0] : memref<16x1xi32, #tpu.memory_space<vmem>>, vector<16x1xi32>
    %c0_1 = arith.constant 0 : index
    %c0_2 = arith.constant 0 : index
    %1 = vector.load %arg2[%c0_1, %c0_2] : memref<3x32xf32, #tpu.memory_space<vmem>>, vector<1x32xf32>
    %c1 = arith.constant 1 : index
    %c0_3 = arith.constant 0 : index
    %2 = vector.load %arg2[%c1, %c0_3] : memref<3x32xf32, #tpu.memory_space<vmem>>, vector<1x32xf32>
    %c2 = arith.constant 2 : index
    %c0_4 = arith.constant 0 : index
    %3 = vector.load %arg2[%c2, %c0_4] : memref<3x32xf32, #tpu.memory_space<vmem>>, vector<1x32xf32>
    %c0_i32 = arith.constant 0 : i32
    %4 = vector.broadcast %c0_i32 : i32 to vector<16x1xi32>
    %5 = arith.cmpi eq, %0, %4 : vector<16x1xi32>
    %c1_i32 = arith.constant 1 : i32
    %6 = vector.broadcast %c1_i32 : i32 to vector<16x1xi32>
    %7 = arith.cmpi eq, %0, %6 : vector<16x1xi32>
    %8 = vector.shape_cast %7 : vector<16x1xi1> to vector<16x1xi1>
    %9 = vector.broadcast %8 : vector<16x1xi1> to vector<16x32xi1>
    %10 = vector.shape_cast %2 : vector<1x32xf32> to vector<1x32xf32>
    %11 = vector.broadcast %10 : vector<1x32xf32> to vector<16x32xf32>
    %12 = vector.shape_cast %3 : vector<1x32xf32> to vector<1x32xf32>
    %13 = vector.broadcast %12 : vector<1x32xf32> to vector<16x32xf32>
    %14 = arith.select %9, %11, %13 : vector<16x32xi1>, vector<16x32xf32>
    %15 = vector.shape_cast %5 : vector<16x1xi1> to vector<16x1xi1>
    %16 = vector.broadcast %15 : vector<16x1xi1> to vector<16x32xi1>
    %17 = vector.shape_cast %1 : vector<1x32xf32> to vector<1x32xf32>
    %18 = vector.broadcast %17 : vector<1x32xf32> to vector<16x32xf32>
    %19 = arith.select %16, %18, %14 : vector<16x32xi1>, vector<16x32xf32>
    %c0_5 = arith.constant 0 : index
    %c0_6 = arith.constant 0 : index
    %20 = vector.load %arg3[%c0_5, %c0_6] : memref<16x32xf32, #tpu.memory_space<vmem>>, vector<16x32xf32>
    tpu.vector_store %arg3[%c0_5, %c0_6], %19 {strides = array<i32>} : memref<16x32xf32, #tpu.memory_space<vmem>>, vector<16x32xf32>,
    return
  }
  func.func @transform_0(%arg0: i32) -> (i32, i32) {
    %c0_i32 = arith.constant 0 : i32
    %c0_i32_0 = arith.constant 0 : i32
    return %arg0, %c0_i32 : i32, i32
  }
  func.func @transform_1(%arg0: i32) -> (i32, i32) {
    %c0_i32 = arith.constant 0 : i32
    %c0_i32_0 = arith.constant 0 : i32
    %c0_i32_1 = arith.constant 0 : i32
    return %c0_i32, %c0_i32_0 : i32, i32
  }
  func.func @transform_2(%arg0: i32) -> (i32, i32) {
    %c0_i32 = arith.constant 0 : i32
    %c0_i32_0 = arith.constant 0 : i32
    return %arg0, %c0_i32 : i32, i32
  }
}

</mosaic_0001>

<llo_original>
// kernel: tpu_custom_call.1
$region0: #{tpu_custom_call.1}
  #allocation0 [shape = 'u32[]', space=smem, size = 0x4, offset = 0x4, fixed_abs, tag = 'smem constant byte address 0x4 - core index']
  #allocation1 [shape = 'u32[144,128]{1,0:T(1,128)}', space=vmem, size = 0x12000, scoped, tag = 'internal scratch']
  %s0 = inlined_call_operand.vmem [shape: s32[16,1], index: 0, kind: input, shape index: {}]
  %s1 = inlined_call_operand.vmem [shape: f32[3,32], index: 1, kind: input, shape index: {}]
  %s2 = inlined_call_operand.hbm [shape: f32[16,32], index: 2, kind: output, shape index: {}]
  %s3 = sld [smem:[#allocation0]]
  $region18: #{tpu_custom_call.1} parent=0
    _
  %s5 = ssub.s32 1, %s3
  %s6 = scalar_select 0, %s5, %s3
  $region1: #{tpu_custom_call.1} parent=0
    #allocation2 [shape = 'u8[8192]{0}', space=vmem, size = 0x2000, scoped, tag = 'output window, operand 0, single buffered']
    #allocation3 [shape = 's32[1]{0}', space=sflag, size = 0x4, scoped, tag = 'scoped memory for tpu_custom_call.1']
    %7 = vsyncpa [#allocation3], 0
    // Predicated region
    $region2: #{tpu_custom_call.1} parent=1 // pred_check
      _
    $region3: #{tpu_custom_call.1} parent=1 // pred_check_branch
      %9 = sbr.rel (0) target = $region5
    $region4: #{tpu_custom_call.1} parent=1 // pred_region
      _
    $region5: #{tpu_custom_call.1} parent=1 // pred_fallthru
      _
    // Predicated region
    $region6: #{tpu_custom_call.1} parent=1 // pred_check
      _
    $region7: #{tpu_custom_call.1} parent=1 // pred_check_branch
      %11 = sbr.rel (0) target = $region9
    $region8: #{tpu_custom_call.1} parent=1 // pred_region
      _
    $region9: #{tpu_custom_call.1} parent=1 // pred_fallthru
      _
    %v12 = vld [vmem:[%s0] sm:$0xff]
    %v13 = vld [vmem:[%s0 + $0x8] sm:$0xff]
    %v14 = vld [vmem:[%s1] sm:$0x1]
    %v15 = vld [vmem:[%s1 + $0x1] sm:$0x1]
    %v16 = vld [vmem:[%s1 + $0x2] sm:$0x1]
    %vm17 = vcmp.eq.s32.totalorder %v12, 0
    %vm18 = vcmp.eq.s32.totalorder %v13, 0
    %vm19 = vcmp.eq.s32.totalorder %v12, 1
    %vm20 = vcmp.eq.s32.totalorder %v13, 1
    %v21 = vsel %vm19, 1, 0
    %v22 = vsel %vm20, 1, 0
    %23 = vset.pattern.permute.xlu0 0
    %24 = vperm.xlu0 %23, %v21
    %v25 = vpop.permute.xlu0 %24
    %26 = vset.pattern.permute.xlu0 0
    %27 = vperm.xlu0 %26, %v22
    %v28 = vpop.permute.xlu0 %27
    %vm29 = vcmp.eq.s32.totalorder %v25, 1
    %vm30 = vcmp.eq.s32.totalorder %v28, 1
    %v31 = vlaneseq
    %v32 = vshrl.u32 %v31, 7
    %v33 = vsub.s32 0, %v32
    %v34 = vrot.slane %v15, %v33
    %v35 = vlaneseq
    %v36 = vshrl.u32 %v35, 7
    %v37 = vsub.s32 0, %v36
    %v38 = vrot.slane %v16, %v37
    %v39 = vsel %vm29, %v34, %v38
    %v40 = vsel %vm30, %v34, %v38
    %v41 = vsel %vm17, 1, 0
    %v42 = vsel %vm18, 1, 0
    %43 = vset.pattern.permute.xlu0 0
    %44 = vperm.xlu0 %43, %v41
    %v45 = vpop.permute.xlu0 %44
    %46 = vset.pattern.permute.xlu0 0
    %47 = vperm.xlu0 %46, %v42
    %v48 = vpop.permute.xlu0 %47
    %vm49 = vcmp.eq.s32.totalorder %v45, 1
    %vm50 = vcmp.eq.s32.totalorder %v48, 1
    %v51 = vlaneseq
    %v52 = vshrl.u32 %v51, 7
    %v53 = vsub.s32 0, %v52
    %v54 = vrot.slane %v14, %v53
    %v55 = vsel %vm49, %v54, %v39
    %v56 = vsel %vm50, %v54, %v40
    %vm57 = vcmask 261120
    %58 = vst.msk [vmem:[#allocation2] sm:$0xff] %vm57, %v55
    %59 = vst.msk [vmem:[#allocation2 + $0x8] sm:$0xff] %vm57, %v56
    // Predicated region
    $region10: #{tpu_custom_call.1} parent=1 // pred_check
      _
    $region11: #{tpu_custom_call.1} parent=1 // pred_check_branch
      %61 = sbr.rel (0) target = $region13
    $region12: #{tpu_custom_call.1} parent=1 // pred_region
      %s63 = ssub.s32 256, 256
      %64 = vsyncadd [#allocation3], %s63
      %s65 = sshll.u32 [#allocation2], 4
      %s66 = int_to_ptr.vmem [resolvable:$true] %s65
      %71 = dma.vmem_to_hbm [thread:$0]  %s66, 256, %s2, [#allocation3], 128, 128, 8
    $region13: #{tpu_custom_call.1} parent=1 // pred_fallthru
      _
    // Predicated region
    $region14: #{tpu_custom_call.1} parent=1 // pred_check
      _
    $region15: #{tpu_custom_call.1} parent=1 // pred_check_branch
      %73 = sbr.rel (0) target = $region17
    $region16: #{tpu_custom_call.1} parent=1 // pred_region
      %74 = dma.done [#allocation3], 256
    $region17: #{tpu_custom_call.1} parent=1 // pred_fallthru
      _
    %75 = vsyncpa [#allocation3], 1

</llo_original>
